<compile_context>
chip_gen: v6e
topology: v6e:2x2x1
jax: 0.10.0
libtpu: 0.0.40
codegen_flags: <defaults>
</compile_context>

<pallas_src>
import jax
import jax.numpy as jnp
from jax.experimental import pallas as pl
from jax.experimental.pallas import tpu as pltpu


# ----------------------------------------------------------------------------- kernel
def _swish_kernel(x_ref, o_ref):
    xf = x_ref[...].astype(jnp.float32)
    o_ref[...] = (xf * jax.nn.sigmoid(xf)).astype(o_ref.dtype)


# ----------------------------------------------------------------------------- helpers
def _cdiv(a, b):
    return -(-a // b)


def _sublane_multiple(dtype):
    """Rows-per-vreg sublane pack: 8 for 4-byte, 16 for 2-byte, 32 for 1-byte."""
    return max(8, 32 // jnp.dtype(dtype).itemsize)


def _tpu_config():
    """Best-effort, generation-aware (block_bytes, vmem_limit_bytes, num_tensorcores).

    Conservative defaults are safe on every generation:
      2 in + 2 out double-buffered 8 MiB blocks = 32 MiB < 40 MiB scoped limit
      <= 64 MiB (v7x per-TC VMEM) < 128 MiB (v5e/v6e).
    """
    block_bytes = 8 * 1024 * 1024
    vmem_limit = 40 * 1024 * 1024
    num_tc = 1

    vmem_cap = None
    try:
        info = pltpu.get_tpu_info()
        for attr in ("vmem_capacity_bytes", "vmem_bytes", "vmem_size_bytes"):
            if hasattr(info, attr):
                vmem_cap = int(getattr(info, attr))
                break
    except Exception:
        pass

    try:
        kind = jax.devices()[0].device_kind.lower().replace(" ", "")
        # v7x has 2 TensorCores per chip; v4/v5p megacore also shard
        # "parallel" grid axes across 2 cores.
        if "v7" in kind or "v4" in kind or "v5p" in kind:
            num_tc = 2
    except Exception:
        pass

    if vmem_cap is not None and vmem_cap >= 100 * 1024 * 1024:
        # 128 MiB-VMEM parts (v5e/v6e): bigger blocks shave per-step overhead.
        block_bytes = 16 * 1024 * 1024
        vmem_limit = 80 * 1024 * 1024

    return block_bytes, vmem_limit, num_tc


def _pick_tile_rows(rows, sub, target_rows, num_tc):
    """Pick a sublane-aligned tile height; prefer even, >=4-step grids on multi-TC chips."""
    if rows <= target_rows:
        if num_tc <= 1 or rows < 4 * sub:
            # Single-TC (v5e/v6e) or too small to split usefully: one block,
            # no pointless extra grid steps / smaller DMAs.
            return rows
        tile = max(sub, (rows // 4) // sub * sub)   # >=4 blocks -> >=2 per TC
    else:
        tile = target_rows

    if num_tc > 1:
        # Prefer an even number of grid steps so the two TensorCores balance.
        if _cdiv(rows, tile) % 2 == 1:
            t = tile - sub
            for _ in range(64):  # bounded search over smaller aligned tiles
                if t < sub:
                    break
                if _cdiv(rows, t) % 2 == 0:
                    tile = t
                    break
                t -= sub
    return tile


# ----------------------------------------------------------------------------- pallas wrappers
def _swish_2d(x2d, tile_rows, vmem_limit_bytes, donate):
    rows, width = x2d.shape
    grid = (_cdiv(rows, tile_rows),)
    extra = {"input_output_aliases": {0: 0}} if donate else {}
    return pl.pallas_call(
        _swish_kernel,
        out_shape=jax.ShapeDtypeStruct((rows, width), x2d.dtype),
        grid_spec=pltpu.PrefetchScalarGridSpec(
            num_scalar_prefetch=0,
            grid=grid,
            in_specs=[pl.BlockSpec((tile_rows, width), lambda i: (i, 0))],
            out_specs=pl.BlockSpec((tile_rows, width), lambda i: (i, 0)),
        ),
        compiler_params=pltpu.CompilerParams(
            dimension_semantics=("parallel",),
            vmem_limit_bytes=vmem_limit_bytes,
        ),
        **extra,
    )(x2d)


def _swish_flat(x_flat, target_block_bytes, vmem_limit_bytes, num_tc, donate):
    """Swish on a 1-D array whose size is a multiple of 128 (and >= 128)."""
    n = x_flat.size
    dtype = x_flat.dtype
    sub = _sublane_multiple(dtype)

    # Widest lane-dense width that divides n exactly AND yields >= sub rows
    # (full-sublane vregs, unmasked vst).  Fall back to any divisor for tiny n.
    width = None
    for w in (8192, 4096, 2048, 1024, 512, 256, 128):
        if n % w == 0 and n // w >= sub:
            width = w
            break
    if width is None:
        for w in (8192, 4096, 2048, 1024, 512, 256, 128):
            if n % w == 0:
                width = w
                break

    rows = n // width
    x2d = x_flat.reshape(rows, width)

    itemsize = jnp.dtype(dtype).itemsize
    target_rows = max(sub, (target_block_bytes // (width * itemsize)) // sub * sub)
    tile_rows = _pick_tile_rows(rows, sub, target_rows, num_tc)

    out2d = _swish_2d(x2d, tile_rows, vmem_limit_bytes, donate)
    return out2d.reshape(-1)


def _swish_jnp(x):
    xf = x.astype(jnp.float32)
    return (xf * jax.nn.sigmoid(xf)).astype(x.dtype)


# ----------------------------------------------------------------------------- public entry
def swish(x, *, donate_input=False):
    """Elementwise swish (x * sigmoid(x)) on an arbitrary-shaped array via Pallas."""
    dtype = x.dtype
    if not jnp.issubdtype(dtype, jnp.floating):
        raise TypeError(f"swish kernel requires a floating dtype, got {dtype}")

    n = x.size
    if n == 0:
        return x

    orig_shape = x.shape
    x_flat = x.reshape(-1)

    if n < 128:
        # Sub-vreg-width input: a kernel launch buys nothing; plain jnp.
        return _swish_jnp(x_flat).reshape(orig_shape)

    target_block_bytes, vmem_limit_bytes, num_tc = _tpu_config()

    main_n = (n // 128) * 128
    if main_n == n:
        out_flat = _swish_flat(
            x_flat, target_block_bytes, vmem_limit_bytes, num_tc, donate_input
        )
    else:
        # Unaligned size: kernel over the 128-aligned prefix, plain jnp for the
        # (<128-element) tail.  No whole-tensor pad/slice copies.
        main_out = _swish_flat(
            x_flat[:main_n], target_block_bytes, vmem_limit_bytes, num_tc, donate_input
        )
        tail_out = _swish_jnp(x_flat[main_n:])
        out_flat = jnp.concatenate([main_out, tail_out])

    return out_flat.reshape(orig_shape)


# ----------------------------------------------------------------------------- demo / check
if __name__ == "__main__":
    key = jax.random.PRNGKey(0)

    # Primary case: NCHW activation, f32, 128-aligned size -> kernel fast path.
    x = jax.random.normal(key, (2, 4, 16, 16), dtype=jnp.float32)
    y = jax.block_until_ready(swish(x))
    y_ref = x * jax.nn.sigmoid(x)
    assert y.shape == x.shape and y.dtype == x.dtype
    assert jnp.allclose(y, y_ref, atol=1e-6, rtol=1e-6)

    # bf16 case: exercises the min-rows width picker + sublane-pack alignment.
    xb = jax.random.normal(jax.random.PRNGKey(1), (4, 64, 32), dtype=jnp.bfloat16)
    yb = jax.block_until_ready(swish(xb))
    xbf = xb.astype(jnp.float32)
    yb_ref = (xbf * jax.nn.sigmoid(xbf)).astype(jnp.bfloat16)
    assert yb.shape == xb.shape and yb.dtype == xb.dtype
    assert jnp.allclose(
        yb.astype(jnp.float32), yb_ref.astype(jnp.float32), atol=1e-2, rtol=1e-2
    )

    # Unaligned size: kernel on the 128-aligned prefix, jnp tail.
    xu = jax.random.normal(jax.random.PRNGKey(2), (2, 3, 100), dtype=jnp.float32)
    yu = jax.block_until_ready(swish(xu))
    yu_ref = xu * jax.nn.sigmoid(xu)
    assert yu.shape == xu.shape and yu.dtype == xu.dtype
    assert jnp.allclose(yu, yu_ref, atol=1e-6, rtol=1e-6)

    print("KERNEL_OK")
</pallas_src>

<mosaic_0001>
module attributes {stable_mosaic.version = 11 : i64} {
  func.func @_swish_kernel(%arg0: i32, %arg1: memref<8x256xf32, #tpu.memory_space<vmem>>, %arg2: memref<8x256xf32, #tpu.memory_space<vmem>>) attributes {dimension_semantics = [#tpu.dimension_semantics<parallel>], iteration_bounds = array<i64: 1>, scalar_prefetch = 0 : i64, scratch_operands = 0 : i64, tpu.core_type = #tpu.core_type<tc>, window_params = [{transform_indices = @transform_0, window_bounds = array<i64: 8, 256>}, {transform_indices = @transform_1, window_bounds = array<i64: 8, 256>}]} {
    %c0 = arith.constant 0 : index
    %c0_0 = arith.constant 0 : index
    %0 = vector.load %arg1[%c0, %c0_0] : memref<8x256xf32, #tpu.memory_space<vmem>>, vector<8x256xf32>
    %1 = arith.negf %0 : vector<8x256xf32>
    %2 = math.exp %1 : vector<8x256xf32>
    %cst = arith.constant 1.000000e+00 : f32
    %3 = vector.broadcast %cst : f32 to vector<8x256xf32>
    %4 = arith.addf %3, %2 : vector<8x256xf32>
    %5 = arith.divf %3, %4 : vector<8x256xf32>
    %6 = arith.mulf %0, %5 : vector<8x256xf32>
    %c0_1 = arith.constant 0 : index
    %c0_2 = arith.constant 0 : index
    %7 = vector.load %arg2[%c0_1, %c0_2] : memref<8x256xf32, #tpu.memory_space<vmem>>, vector<8x256xf32>
    tpu.vector_store %arg2[%c0_1, %c0_2], %6 {strides = array<i32>} : memref<8x256xf32, #tpu.memory_space<vmem>>, vector<8x256xf32>,
    return
  }
  func.func @transform_0(%arg0: i32) -> (i32, i32) {
    %c0_i32 = arith.constant 0 : i32
    %c0_i32_0 = arith.constant 0 : i32
    return %arg0, %c0_i32 : i32, i32
  }
  func.func @transform_1(%arg0: i32) -> (i32, i32) {
    %c0_i32 = arith.constant 0 : i32
    %c0_i32_0 = arith.constant 0 : i32
    return %arg0, %c0_i32 : i32, i32
  }
}

</mosaic_0001>

<llo_original>
// kernel: tpu_custom_call.1
$region0: #{tpu_custom_call.1}
  #allocation0 [shape = 'u32[]', space=smem, size = 0x4, offset = 0x4, fixed_abs, tag = 'smem constant byte address 0x4 - core index']
  #allocation1 [shape = 'u32[144,128]{1,0:T(1,128)}', space=vmem, size = 0x12000, scoped, tag = 'internal scratch']
  %s0 = inlined_call_operand.hbm [shape: f32[8,256], index: 0, kind: input, shape index: {}]
  %s1 = inlined_call_operand.hbm [shape: f32[8,256], index: 1, kind: output, shape index: {}]
  %s2 = sld [smem:[#allocation0]]
  $region18: #{tpu_custom_call.1} parent=0
    _
  %s4 = ssub.s32 1, %s2
  %s5 = scalar_select 0, %s4, %s2
  $region1: #{tpu_custom_call.1} parent=0
    #allocation2 [shape = 'u8[8192]{0}', space=vmem, size = 0x2000, scoped, tag = 'input window, operand 0, single buffered']
    #allocation3 [shape = 's32[1]{0}', space=sflag, size = 0x4, scoped, tag = 'scoped memory for tpu_custom_call.1']
    #allocation4 [shape = 's32[1]{0}', space=sflag, size = 0x4, scoped, tag = 'scoped memory for tpu_custom_call.1']
    #allocation5 [shape = 'u8[8192]{0}', space=vmem, size = 0x2000, scoped, tag = 'output window, operand 0, single buffered']
    %6 = vsyncpa [#allocation3], 0
    %7 = vsyncpa [#allocation4], 0
    // Predicated region
    $region2: #{tpu_custom_call.1} parent=1 // pred_check
      _
    $region3: #{tpu_custom_call.1} parent=1 // pred_check_branch
      %9 = sbr.rel (0) target = $region5
    $region4: #{tpu_custom_call.1} parent=1 // pred_region
      %s11 = ssub.s32 256, 256
      %12 = vsyncadd [#allocation3], %s11
      %s14 = sshll.u32 [#allocation2], 4
      %s15 = int_to_ptr.vmem [resolvable:$true] %s14
      %17 = dma.hbm_to_vmem [thread:$0]  %s0, 256, %s15, [#allocation3]
    $region5: #{tpu_custom_call.1} parent=1 // pred_fallthru
      _
    // Predicated region
    $region6: #{tpu_custom_call.1} parent=1 // pred_check
      _
    $region7: #{tpu_custom_call.1} parent=1 // pred_check_branch
      %19 = sbr.rel (0) target = $region9
    $region8: #{tpu_custom_call.1} parent=1 // pred_region
      %20 = dma.done [#allocation3], 256
    $region9: #{tpu_custom_call.1} parent=1 // pred_fallthru
      _
    %v21 = vld [vmem:[#allocation2] sm:$0xff]
    %v22 = vld [vmem:[#allocation2 + $0x8] sm:$0xff]
    %v23 = vxor.u32 %v21, 2147483648
    %v24 = vxor.u32 %v22, 2147483648
    %v25 = vmul.f32 %v23, 1.442695
    %v26 = vpow.pop %v25
    %v27 = vmul.f32 %v24, 1.442695
    %v28 = vpow.pop %v27
    %v29 = vadd.f32 %v26, 1.0
    %v30 = vadd.f32 %v28, 1.0
    %v31 = vrcp.pop %v29
    %v32 = vmul.f32 1.0, %v31
    %v33 = vrcp.pop %v30
    %v34 = vmul.f32 1.0, %v33
    %v35 = vmul.f32 %v21, %v32
    %v36 = vmul.f32 %v22, %v34
    %37 = vst [vmem:[#allocation5] sm:$0xff] %v35
    %38 = vst [vmem:[#allocation5 + $0x8] sm:$0xff] %v36
    // Predicated region
    $region10: #{tpu_custom_call.1} parent=1 // pred_check
      _
    $region11: #{tpu_custom_call.1} parent=1 // pred_check_branch
      %40 = sbr.rel (0) target = $region13
    $region12: #{tpu_custom_call.1} parent=1 // pred_region
      %s42 = ssub.s32 256, 256
      %43 = vsyncadd [#allocation4], %s42
      %s45 = sshll.u32 [#allocation5], 4
      %s46 = int_to_ptr.vmem [resolvable:$true] %s45
      %48 = dma.vmem_to_hbm [thread:$0]  %s46, 256, %s1, [#allocation4]
    $region13: #{tpu_custom_call.1} parent=1 // pred_fallthru
      _
    // Predicated region
    $region14: #{tpu_custom_call.1} parent=1 // pred_check
      _
    $region15: #{tpu_custom_call.1} parent=1 // pred_check_branch
      %50 = sbr.rel (0) target = $region17
    $region16: #{tpu_custom_call.1} parent=1 // pred_region
      %51 = dma.done [#allocation4], 256
    $region17: #{tpu_custom_call.1} parent=1 // pred_fallthru
      _
    %52 = vsyncpa [#allocation3], 1
    %53 = vsyncpa [#allocation4], 1

</llo_original>
